<compile_context>
chip_gen: v7x
topology: tpu7x:2x2x1
jax: 0.10.0
libtpu: 0.0.40
codegen_flags: <defaults>
</compile_context>

<pallas_src>
import math

import jax
import jax.numpy as jnp
from jax.experimental import pallas as pl
from jax.experimental.pallas import tpu as pltpu


def _round_up(x, m):
    return ((x + m - 1) // m) * m


def _const_block_spec(block_shape, index_map):
    # Constant-index operand: DMA'd once; ask the pipeline for a single VMEM buffer.
    # Fall back to the default (double-buffered) spec if this JAX lacks the kwarg.
    try:
        return pl.BlockSpec(block_shape, index_map, pipeline_mode=pl.Buffered(1))
    except (TypeError, AttributeError):
        return pl.BlockSpec(block_shape, index_map)


def _patch_embed_kernel(p_ref, w_ref, bpp_ref, cls_ref, out_ref):
    # p_ref:   (per*N, K_pad)    compute dtype (bf16)  — per-step patch tile
    # w_ref:   (K_pad, E_pad)    compute dtype         — constant, single-buffered
    # bpp_ref: (N, E_pad)        f32 (conv bias + positions[1:]) — constant
    # cls_ref: (1, E_pad)        f32 (cls_token + positions[0])  — constant
    # out_ref: (per, N+1, E_pad) f32                   — per-step output slab
    per, seq, e_pad = out_ref.shape
    n = seq - 1
    acc = jnp.dot(p_ref[...], w_ref[...], preferred_element_type=jnp.float32)
    # (per*N, E_pad) -> (per, N, E_pad); a free reshape when N is sublane-aligned.
    acc = acc.reshape(per, n, e_pad) + bpp_ref[...][None, :, :]
    out_ref[:, 1:, :] = acc.astype(out_ref.dtype)
    cls = jnp.broadcast_to(cls_ref[...][None, :, :], (per, 1, e_pad))
    out_ref[:, 0:1, :] = cls.astype(out_ref.dtype)


def patch_embedding_forward(x, conv_w, conv_b, cls_token, positions, patch_size,
                            compute_dtype=jnp.bfloat16, out_dtype=jnp.float32,
                            target_rows=2048,
                            vmem_budget_bytes=40 * 1024 * 1024):
    """x: (B, C, H, W). Returns (B, N+1, E) in out_dtype (f32 matches the module)."""
    B, C, H, W = x.shape
    P = patch_size
    Hp, Wp = H // P, W // P
    N = Hp * Wp
    E = conv_w.shape[0]
    K = C * P * P
    cbytes = jnp.dtype(compute_dtype).itemsize
    obytes = jnp.dtype(out_dtype).itemsize

    # --- XLA glue: non-overlapping patch extraction, feature order (c, kh, kw) ---
    # Cast to the compute dtype first so the transpose moves half the bytes.
    # TODO(synk): fuse the NCHW -> (B*N, K) patch extraction into the kernel
    # (BlockSpec over raw images + in-kernel XLU transpose) to cut input HBM traffic.
    xq = x.astype(compute_dtype)
    patches = xq.reshape(B, C, Hp, P, Wp, P)
    patches = patches.transpose(0, 2, 4, 1, 3, 5).reshape(B * N, K)

    # --- pad lane (last) dims to multiples of 128 (no-op for real ViT shapes) ---
    K_pad = _round_up(K, 128)
    E_pad = _round_up(E, 128)

    w_flat = conv_w.reshape(E, K).T.astype(compute_dtype)            # (K, E)
    if K_pad != K or E_pad != E:
        w_flat = jnp.pad(w_flat, ((0, K_pad - K), (0, E_pad - E)))
    if K_pad != K:
        patches = jnp.pad(patches, ((0, 0), (0, K_pad - K)))

    # --- batch-invariant fused operands, kept compact in f32 ---
    bpp = (conv_b.reshape(1, E) + positions[1:, :]).astype(jnp.float32)     # (N, E)
    cls_row = (cls_token.reshape(1, E) + positions[0:1, :]).astype(jnp.float32)
    if E_pad != E:
        bpp = jnp.pad(bpp, ((0, 0), (0, E_pad - E)))
        cls_row = jnp.pad(cls_row, ((0, 0), (0, E_pad - E)))

    # --- choose M tile: per whole images per step, TM = per * N -----------------
    # Align TM to the compute dtype's sublane packing (bf16 packs 16 rows / vreg).
    sub = {1: 32, 2: 16, 4: 8}.get(cbytes, 8)
    align = sub // math.gcd(N, sub)

    # Pipelined bytes per image: patches (x2 buffers) + output slab (x2 buffers).
    per_image_bytes = 2 * N * K_pad * cbytes + 2 * (N + 1) * E_pad * obytes
    const_bytes = K_pad * E_pad * cbytes + N * E_pad * 4 + E_pad * 4
    per_cap = max(1, (vmem_budget_bytes - 2 * const_bytes) // per_image_bytes)
    per = max(1, min(max(1, target_rows // N), per_cap))
    per = _round_up(per, align)
    per = min(per, _round_up(B, align))            # don't over-pad tiny batches
    if B >= 2:
        # Keep at least 2 grid steps so both v7x TensorCores get work.
        per = min(per, max(align, (-(-B // 2) // align) * align))
    TM = per * N
    B_pad = _round_up(B, per)
    grid_m = B_pad // per
    if B_pad != B:
        patches = jnp.pad(patches, ((0, (B_pad - B) * N), (0, 0)))

    # Explicit VMEM limit sized from the actual buffers; stays <= 64 MiB (v7x-safe).
    buf_bytes = per * per_image_bytes + 2 * const_bytes
    vmem_limit = int(min(64 * 1024 * 1024,
                         max(32 * 1024 * 1024, 1.25 * buf_bytes + 8 * 1024 * 1024)))

    out_padded = pl.pallas_call(
        _patch_embed_kernel,
        out_shape=jax.ShapeDtypeStruct((B_pad, N + 1, E_pad), out_dtype),
        grid_spec=pltpu.PrefetchScalarGridSpec(
            num_scalar_prefetch=0,
            grid=(grid_m,),
            in_specs=[
                pl.BlockSpec((TM, K_pad), lambda i: (i, 0)),           # patch tile
                _const_block_spec((K_pad, E_pad), lambda i: (0, 0)),   # weight (once)
                _const_block_spec((N, E_pad), lambda i: (0, 0)),       # bias + pos[1:]
                _const_block_spec((1, E_pad), lambda i: (0, 0)),       # cls + pos[0]
            ],
            out_specs=pl.BlockSpec((per, N + 1, E_pad), lambda i: (i, 0, 0)),
        ),
        compiler_params=pltpu.CompilerParams(
            dimension_semantics=("parallel",),
            vmem_limit_bytes=vmem_limit),
    )(patches, w_flat, bpp, cls_row)

    # Drop batch / embedding padding; cls row is already fused in.
    return out_padded[:B, :, :E]


if __name__ == "__main__":
    # Small shapes consistent with the module:
    #   in_channels=4, patch_size=4, img_size=16  ->  emb_size = 4*4*4 = 64,
    #   num_patches = (16/4)^2 = 16, seq = 17.
    B, C, P, IMG = 2, 4, 4, 16
    E = C * P * P
    N = (IMG // P) ** 2

    key = jax.random.PRNGKey(0)
    k_x, k_w, k_b, k_cls, k_pos = jax.random.split(key, 5)

    x = jax.random.normal(k_x, (B, C, IMG, IMG), dtype=jnp.float32)
    conv_w = jax.random.normal(k_w, (E, C, P, P), dtype=jnp.float32) * 0.02
    conv_b = jax.random.normal(k_b, (E,), dtype=jnp.float32) * 0.02
    cls_token = jax.random.normal(k_cls, (1, 1, E), dtype=jnp.float32)
    positions = jax.random.normal(k_pos, (N + 1, E), dtype=jnp.float32)

    out = patch_embedding_forward(x, conv_w, conv_b, cls_token, positions, P)
    out = jax.block_until_ready(out)

    # Pure-JAX f32 reference (same math as the PyTorch module).
    patches_ref = x.reshape(B, C, IMG // P, P, IMG // P, P)
    patches_ref = patches_ref.transpose(0, 2, 4, 1, 3, 5).reshape(B, N, C * P * P)
    proj_ref = patches_ref @ conv_w.reshape(E, -1).T + conv_b
    cls_ref = jnp.broadcast_to(cls_token, (B, 1, E))
    ref = jnp.concatenate([cls_ref, proj_ref], axis=1) + positions

    assert out.shape == (B, N + 1, E)
    # bf16 inputs with f32 accumulation: allow a slightly looser tolerance.
    assert jnp.allclose(out, ref, atol=2e-2, rtol=2e-2)
    print("KERNEL_OK")
</pallas_src>

<mosaic_0001>
module attributes {stable_mosaic.version = 11 : i64} {
  func.func @_patch_embed_kernel(%arg0: i32, %arg1: memref<16x128xbf16, #tpu.memory_space<vmem>>, %arg2: memref<128x128xbf16, #tpu.memory_space<vmem>>, %arg3: memref<16x128xf32, #tpu.memory_space<vmem>>, %arg4: memref<1x128xf32, #tpu.memory_space<vmem>>, %arg5: memref<1x17x128xf32, #tpu.memory_space<vmem>>) attributes {dimension_semantics = [#tpu.dimension_semantics<parallel>], iteration_bounds = array<i64: 2>, scalar_prefetch = 0 : i64, scratch_operands = 0 : i64, tpu.core_type = #tpu.core_type<tc>, window_params = [{transform_indices = @transform_0, window_bounds = array<i64: 16, 128>}, {pipeline_mode = #tpu.pipeline_mode<synchronous>, transform_indices = @transform_1, window_bounds = array<i64: 128, 128>}, {pipeline_mode = #tpu.pipeline_mode<synchronous>, transform_indices = @transform_2, window_bounds = array<i64: 16, 128>}, {pipeline_mode = #tpu.pipeline_mode<synchronous>, transform_indices = @transform_3, window_bounds = array<i64: 1, 128>}, {transform_indices = @transform_4, window_bounds = array<i64: 1, 17, 128>}]} {
    %c0 = arith.constant 0 : index
    %c0_0 = arith.constant 0 : index
    %0 = vector.load %arg1[%c0, %c0_0] : memref<16x128xbf16, #tpu.memory_space<vmem>>, vector<16x128xbf16>
    %c0_1 = arith.constant 0 : index
    %c0_2 = arith.constant 0 : index
    %1 = vector.load %arg2[%c0_1, %c0_2] : memref<128x128xbf16, #tpu.memory_space<vmem>>, vector<128x128xbf16>
    %cst = arith.constant dense<0.000000e+00> : vector<16x128xf32>
    %2 = tpu.matmul %0, %1, %cst {dimension_numbers = #tpu.dot_dimension_numbers<[1], [0], [0], [1], [0, 0, 1, 1], [], []>} : vector<16x128xbf16>, vector<128x128xbf16>, vector<16x128xf32> -> vector<16x128xf32>
    %3 = vector.shape_cast %2 : vector<16x128xf32> to vector<1x16x128xf32>
    %c0_3 = arith.constant 0 : index
    %c0_4 = arith.constant 0 : index
    %4 = vector.load %arg3[%c0_3, %c0_4] : memref<16x128xf32, #tpu.memory_space<vmem>>, vector<16x128xf32>
    %5 = vector.shape_cast %4 : vector<16x128xf32> to vector<1x16x128xf32>
    %6 = arith.addf %3, %5 : vector<1x16x128xf32>
    %c0_5 = arith.constant 0 : index
    %c1 = arith.constant 1 : index
    %c0_6 = arith.constant 0 : index
    %7 = vector.load %arg5[%c0_5, %c1, %c0_6] : memref<1x17x128xf32, #tpu.memory_space<vmem>>, vector<1x16x128xf32>
    tpu.vector_store %arg5[%c0_5, %c1, %c0_6], %6 {strides = array<i32>} : memref<1x17x128xf32, #tpu.memory_space<vmem>>, vector<1x16x128xf32>,
    %c0_7 = arith.constant 0 : index
    %c0_8 = arith.constant 0 : index
    %8 = vector.load %arg4[%c0_7, %c0_8] : memref<1x128xf32, #tpu.memory_space<vmem>>, vector<1x128xf32>
    %9 = vector.shape_cast %8 : vector<1x128xf32> to vector<1x1x128xf32>
    %c0_9 = arith.constant 0 : index
    %c0_10 = arith.constant 0 : index
    %c0_11 = arith.constant 0 : index
    %10 = vector.load %arg5[%c0_9, %c0_10, %c0_11] : memref<1x17x128xf32, #tpu.memory_space<vmem>>, vector<1x1x128xf32>
    tpu.vector_store %arg5[%c0_9, %c0_10, %c0_11], %9 {strides = array<i32>} : memref<1x17x128xf32, #tpu.memory_space<vmem>>, vector<1x1x128xf32>,
    return
  }
  func.func @transform_0(%arg0: i32) -> (i32, i32) {
    %c0_i32 = arith.constant 0 : i32
    %c0_i32_0 = arith.constant 0 : i32
    return %arg0, %c0_i32 : i32, i32
  }
  func.func @transform_1(%arg0: i32) -> (i32, i32) {
    %c0_i32 = arith.constant 0 : i32
    %c0_i32_0 = arith.constant 0 : i32
    %c0_i32_1 = arith.constant 0 : i32
    return %c0_i32, %c0_i32_0 : i32, i32
  }
  func.func @transform_2(%arg0: i32) -> (i32, i32) {
    %c0_i32 = arith.constant 0 : i32
    %c0_i32_0 = arith.constant 0 : i32
    %c0_i32_1 = arith.constant 0 : i32
    return %c0_i32, %c0_i32_0 : i32, i32
  }
  func.func @transform_3(%arg0: i32) -> (i32, i32) {
    %c0_i32 = arith.constant 0 : i32
    %c0_i32_0 = arith.constant 0 : i32
    %c0_i32_1 = arith.constant 0 : i32
    return %c0_i32, %c0_i32_0 : i32, i32
  }
  func.func @transform_4(%arg0: i32) -> (i32, i32, i32) {
    %c0_i32 = arith.constant 0 : i32
    %c0_i32_0 = arith.constant 0 : i32
    %c0_i32_1 = arith.constant 0 : i32
    return %arg0, %c0_i32, %c0_i32_0 : i32, i32, i32
  }
}

</mosaic_0001>

<llo_original>
// kernel: tpu_custom_call.1
$region0: #{tpu_custom_call.1}
  #allocation0 [shape = 'u32[]', space=smem, size = 0x4, offset = 0x4, fixed_abs, tag = 'smem constant byte address 0x4 - core index']
  #allocation1 [shape = 'u32[144,128]{1,0:T(1,128)}', space=vmem, size = 0x12000, scoped, tag = 'internal scratch']
  %s0 = inlined_call_operand.hbm [shape: bf16[32,128], index: 0, kind: input, shape index: {}]
  %s1 = inlined_call_operand.hbm [shape: bf16[128,128], index: 1, kind: input, shape index: {}]
  %s2 = inlined_call_operand.hbm [shape: f32[16,128], index: 2, kind: input, shape index: {}]
  %s3 = inlined_call_operand.vmem [shape: f32[1,128], index: 3, kind: input, shape index: {}]
  %s4 = inlined_call_operand.vmem [shape: f32[2,17,128], index: 4, kind: output, shape index: {}]
  %s5 = sld [smem:[#allocation0]]
  $region61: #{tpu_custom_call.1} parent=0
    _
  %s7 = ssub.s32 1, %s5
  %s8 = scalar_select 0, %s7, %s5
  $region1: #{tpu_custom_call.1} parent=0
    #allocation2 [shape = 'u8[8192]{0}', space=vmem, size = 0x2000, scoped, tag = 'input window, operand 0']
    #allocation3 [shape = 's32[2]{0}', space=sflag, size = 0x8, scoped, tag = 'scoped memory for tpu_custom_call.1']
    #allocation4 [shape = 'u8[32768]{0}', space=vmem, size = 0x8000, scoped, tag = 'input window, operand 1, single buffered']
    #allocation5 [shape = 's32[1]{0}', space=sflag, size = 0x4, scoped, tag = 'scoped memory for tpu_custom_call.1']
    #allocation6 [shape = 'u8[8192]{0}', space=vmem, size = 0x2000, scoped, tag = 'input window, operand 2, single buffered']
    %9 = vsyncpa [#allocation3], 0
    %s10 = scalar_lea.sflag [#allocation3], 1
    %11 = vsyncpa %s10, 0
    %12 = vsyncpa [#allocation5], 0
    loop: start=0, step=1, limit=4
    $region2: #{tpu_custom_call.1} parent=1 // loop_pre_header
      _
    $region3: #{tpu_custom_call.1} parent=1 // loop_header
      %s14 = sphi 0, %s18
      %p15 = scmp.ge.s32.totalorder %s14, 4
      %s24 = sphi 0, %s26
      %s27 = sphi 0, %s24
      %s28 = sphi 0, %s27
      %s44 = sphi 0, %s28
      %s48 = sphi 0, %s48
      %s50 = sphi 0, %s48
      %s51 = sphi 0, %s50
      %s65 = sphi 0, %s51
      %s69 = sphi 0, %s69
      %s71 = sphi 0, %s69
      %s72 = sphi 0, %s71
      %s86 = sphi 0, %s72
      %s90 = sphi 0, %s90
      %s92 = sphi 0, %s90
      %s93 = sphi 0, %s92
      %s107 = sphi 0, %s93
      %s113 = sphi 0, %s115
      %s116 = sphi 0, %s113
      %s117 = sphi 0, %s116
      %s133 = sphi 0, %s117
    $region4: #{tpu_custom_call.1} parent=1 // loop_header_branch
      %17 = sbr.rel (%p15) target = $region8
    $region5: #{tpu_custom_call.1} parent=1 // loop_body
      %s19 = ssub.s32 %s14, 1
      %s20 = ssub.s32 %s14, 2
      %s21 = sadd.s32 %s14, 1
      %s22 = ssub.s32 %s14, %s21
      %p23 = scmp.eq.s32.totalorder %s22, 0
      %s25 = sadd.s32 %s24, 1
      %s26 = scalar_select %p23, %s24, %s25
      %p29 = pneg %p23
      %p30 = scmp.eq.s32.totalorder %s14, 1
      %p31 = por %p29, %p30
      %p32 = scmp.ne.s32.totalorder %s24, %s27
      %p33 = scmp.eq.s32.totalorder %s14, 0
      %p34 = por %p32, %p33
      %p35 = scmp.ne.s32.totalorder %s24, %s27
      %p36 = scmp.eq.s32.totalorder %s19, 1
      %p37 = por %p35, %p36
      %p38 = scmp.ne.s32.totalorder %s27, %s28
      %p39 = scmp.eq.s32.totalorder %s19, 0
      %p40 = por %p38, %p39
      %p41 = scmp.ne.s32.totalorder %s27, %s28
      %p42 = scmp.eq.s32.totalorder %s20, 1
      %p43 = por %p41, %p42
      %p45 = scmp.ne.s32.totalorder %s28, %s44
      %p46 = scmp.eq.s32.totalorder %s20, 0
      %p47 = por %p45, %p46
      %s49 = sadd.s32 %s48, 1
      %p52 = scmp.eq.s32.totalorder %s14, 1
      %p53 = scmp.ne.s32.totalorder %s48, %s50
      %p54 = scmp.eq.s32.totalorder %s14, 0
      %p55 = por %p53, %p54
      %p56 = scmp.ne.s32.totalorder %s48, %s50
      %p57 = scmp.eq.s32.totalorder %s19, 1
      %p58 = por %p56, %p57
      %p59 = scmp.ne.s32.totalorder %s50, %s51
      %p60 = scmp.eq.s32.totalorder %s19, 0
      %p61 = por %p59, %p60
      %p62 = scmp.ne.s32.totalorder %s50, %s51
      %p63 = scmp.eq.s32.totalorder %s20, 1
      %p64 = por %p62, %p63
      %p66 = scmp.ne.s32.totalorder %s51, %s65
      %p67 = scmp.eq.s32.totalorder %s20, 0
      %p68 = por %p66, %p67
      %s70 = sadd.s32 %s69, 1
      %p73 = scmp.eq.s32.totalorder %s14, 1
      %p74 = scmp.ne.s32.totalorder %s69, %s71
      %p75 = scmp.eq.s32.totalorder %s14, 0
      %p76 = por %p74, %p75
      %p77 = scmp.ne.s32.totalorder %s69, %s71
      %p78 = scmp.eq.s32.totalorder %s19, 1
      %p79 = por %p77, %p78
      %p80 = scmp.ne.s32.totalorder %s71, %s72
      %p81 = scmp.eq.s32.totalorder %s19, 0
      %p82 = por %p80, %p81
      %p83 = scmp.ne.s32.totalorder %s71, %s72
      %p84 = scmp.eq.s32.totalorder %s20, 1
      %p85 = por %p83, %p84
      %p87 = scmp.ne.s32.totalorder %s72, %s86
      %p88 = scmp.eq.s32.totalorder %s20, 0
      %p89 = por %p87, %p88
      %s91 = sadd.s32 %s90, 1
      %p94 = scmp.eq.s32.totalorder %s14, 1
      %p95 = scmp.ne.s32.totalorder %s90, %s92
      %p96 = scmp.eq.s32.totalorder %s14, 0
      %p97 = por %p95, %p96
      %p98 = scmp.ne.s32.totalorder %s90, %s92
      %p99 = scmp.eq.s32.totalorder %s19, 1
      %p100 = por %p98, %p99
      %p101 = scmp.ne.s32.totalorder %s92, %s93
      %p102 = scmp.eq.s32.totalorder %s19, 0
      %p103 = por %p101, %p102
      %p104 = scmp.ne.s32.totalorder %s92, %s93
      %p105 = scmp.eq.s32.totalorder %s20, 1
      %p106 = por %p104, %p105
      %p108 = scmp.ne.s32.totalorder %s93, %s107
      %p109 = scmp.eq.s32.totalorder %s20, 0
      %p110 = por %p108, %p109
      %s111 = ssub.s32 %s14, %s21
      %p112 = scmp.eq.s32.totalorder %s111, 0
      %s114 = sadd.s32 %s113, 1
      %s115 = scalar_select %p112, %s113, %s114
      %p118 = pneg %p112
      %p119 = scmp.eq.s32.totalorder %s14, 1
      %p120 = por %p118, %p119
      %p121 = scmp.ne.s32.totalorder %s113, %s116
      %p122 = scmp.eq.s32.totalorder %s14, 0
      %p123 = por %p121, %p122
      %p124 = scmp.ne.s32.totalorder %s113, %s116
      %p125 = scmp.eq.s32.totalorder %s19, 1
      %p126 = por %p124, %p125
      %p127 = scmp.ne.s32.totalorder %s116, %s117
      %p128 = scmp.eq.s32.totalorder %s19, 0
      %p129 = por %p127, %p128
      %p130 = scmp.ne.s32.totalorder %s116, %s117
      %p131 = scmp.eq.s32.totalorder %s20, 1
      %p132 = por %p130, %p131
      %p134 = scmp.ne.s32.totalorder %s117, %s133
      %p135 = scmp.eq.s32.totalorder %s20, 0
      %p136 = por %p134, %p135
      %p137 = scmp.le.s32.totalorder 1, %s14
      %p138 = scmp.lt.s32.totalorder %s14, 3
      %p139 = pnand %p137, %p138
      %p140 = pneg %p139
      // Predicated region
      $region9: #{tpu_custom_call.1} parent=5 // pred_check
        _
      $region10: #{tpu_custom_call.1} parent=5 // pred_check_branch
        %142 = sbr.rel (%p139) target = $region12
      $region11: #{tpu_custom_call.1} parent=5 // pred_region
        %s143 = ssub.s32 %s14, 1
        // Predicated region
        $region13: #{tpu_custom_call.1} parent=11 // pred_check
          %p144 = pneg %p61
        $region14: #{tpu_custom_call.1} parent=11 // pred_check_branch
          %146 = sbr.rel (%p144) target = $region16
        $region15: #{tpu_custom_call.1} parent=11 // pred_region
          %s148 = ssub.s32 1024, 1024
          %149 = vsyncadd [#allocation5], %s148
          %s150 = sshll.u32 [#allocation4], 4
          %s151 = int_to_ptr.vmem [resolvable:$true] %s150
          %156 = dma.hbm_to_vmem [thread:$0]  %s1, 1024, %s151, [#allocation5], 64, 64, 4
        $region16: #{tpu_custom_call.1} parent=11 // pred_fallthru
          _
        // Predicated region
        $region17: #{tpu_custom_call.1} parent=11 // pred_check
          %p157 = pneg %p82
        $region18: #{tpu_custom_call.1} parent=11 // pred_check_branch
          %159 = sbr.rel (%p157) target = $region20
        $region19: #{tpu_custom_call.1} parent=11 // pred_region
          %s161 = ssub.s32 256, 256
          %162 = vsyncadd [#allocation5], %s161
          %s163 = sshll.u32 [#allocation6], 4
          %s164 = int_to_ptr.vmem [resolvable:$true] %s163
          %169 = dma.hbm_to_vmem [thread:$0]  %s2, 256, %s164, [#allocation5], 128, 128, 8
        $region20: #{tpu_custom_call.1} parent=11 // pred_fallthru
          _
        // Predicated region
        $region21: #{tpu_custom_call.1} parent=11 // pred_check
          %p170 = pneg %p103
        $region22: #{tpu_custom_call.1} parent=11 // pred_check_branch
          %172 = sbr.rel (%p170) target = $region24
        $region23: #{tpu_custom_call.1} parent=11 // pred_region
          _
        $region24: #{tpu_custom_call.1} parent=11 // pred_fallthru
          _
      $region12: #{tpu_custom_call.1} parent=5 // pred_fallthru
        _
      %p173 = scmp.lt.s32.totalorder %s14, 2
      // Predicated region
      $region25: #{tpu_custom_call.1} parent=5 // pred_check
        %p174 = pneg %p173
      $region26: #{tpu_custom_call.1} parent=5 // pred_check_branch
        %176 = sbr.rel (%p174) target = $region28
      $region27: #{tpu_custom_call.1} parent=5 // pred_region
        // Predicated region
        $region29: #{tpu_custom_call.1} parent=27 // pred_check
          %p177 = pneg %p34
        $region30: #{tpu_custom_call.1} parent=27 // pred_check_branch
          %179 = sbr.rel (%p177) target = $region32
        $region31: #{tpu_custom_call.1} parent=27 // pred_region
          %s180 = sand.u32 %s24, 1
          %s181 = scalar_lea.sflag [#allocation3], %s180
          %s182 = sand.u32 %s24, 1
          %s183 = smul.addr %s182, 8
          %s184 = scalar_lea.vmem [#allocation2], %s183
          %s185 = smul.u32 2, %s14
          %s187 = ssub.s32 128, 128
          %188 = vsyncadd %s181, %s187
          %s189 = smul.addr %s185, 64
          %s190 = scalar_lea.hbm %s0, %s189
          %s191 = sshll.u32 %s184, 4
          %s192 = int_to_ptr.vmem [resolvable:$true] %s191
          %197 = dma.hbm_to_vmem [thread:$0]  %s190, 128, %s192, %s181, 64, 64, 4
        $region32: #{tpu_custom_call.1} parent=27 // pred_fallthru
          _
      $region28: #{tpu_custom_call.1} parent=5 // pred_fallthru
        _
      %p198 = scmp.le.s32.totalorder 1, %s14
      %p199 = scmp.lt.s32.totalorder %s14, 3
      %p200 = pnand %p198, %p199
      %p201 = pneg %p200
      // Predicated region
      $region33: #{tpu_custom_call.1} parent=5 // pred_check
        _
      $region34: #{tpu_custom_call.1} parent=5 // pred_check_branch
        %203 = sbr.rel (%p200) target = $region36
      $region35: #{tpu_custom_call.1} parent=5 // pred_region
        %s204 = ssub.s32 %s14, 1
        %s205 = sand.u32 %s27, 1
        %s206 = scalar_lea.sflag [#allocation3], %s205
        %s207 = sand.u32 %s27, 1
        %s208 = smul.addr %s207, 8
        %s209 = scalar_lea.vmem [#allocation2], %s208
        // Predicated region
        $region37: #{tpu_custom_call.1} parent=35 // pred_check
          %p210 = pneg %p40
        $region38: #{tpu_custom_call.1} parent=35 // pred_check_branch
          %212 = sbr.rel (%p210) target = $region40
        $region39: #{tpu_custom_call.1} parent=35 // pred_region
          %213 = dma.done %s206, 128
        $region40: #{tpu_custom_call.1} parent=35 // pred_fallthru
          _
        // Predicated region
        $region41: #{tpu_custom_call.1} parent=35 // pred_check
          %p214 = pneg %p61
        $region42: #{tpu_custom_call.1} parent=35 // pred_check_branch
          %216 = sbr.rel (%p214) target = $region44
        $region43: #{tpu_custom_call.1} parent=35 // pred_region
          %217 = dma.done [#allocation5], 1024
        $region44: #{tpu_custom_call.1} parent=35 // pred_fallthru
          _
        // Predicated region
        $region45: #{tpu_custom_call.1} parent=35 // pred_check
          %p218 = pneg %p82
        $region46: #{tpu_custom_call.1} parent=35 // pred_check_branch
          %220 = sbr.rel (%p218) target = $region48
        $region47: #{tpu_custom_call.1} parent=35 // pred_region
          %221 = dma.done [#allocation5], 256
        $region48: #{tpu_custom_call.1} parent=35 // pred_fallthru
          _
        %s222 = sand.u32 %s27, 1
        %s223 = scalar_lea.sflag [#allocation3], %s222
        %s224 = sand.u32 %s27, 1
        %s225 = smul.addr %s224, 8
        %s226 = scalar_lea.vmem [#allocation2], %s225
        %p227 = pneg %p40
        %p228 = pneg %p37
        %p229 = pneg %p61
        %p230 = pneg %p58
        %p231 = pneg %p82
        %p232 = pneg %p79
        %p233 = pneg %p103
        %p234 = pneg %p100
        %p235 = pneg %p129
        %p236 = pneg %p126
        %p237 = scmp.lt.s32.totalorder %s19, 1
        %s238 = scalar_select %p237, %s19, 1
        %s239 = smul.addr %s238, 3
        %s240 = smul.addr %s239, 8
        %s241 = scalar_lea.vmem %s4, %s240
        %s242 = smul.u32 2, %s19
        %p243 = scmp.lt.s32.totalorder %s19, 1
        %s244 = scalar_select %p243, %s19, 1
        %s245 = smul.addr %s244, 3
        %s246 = smul.addr %s245, 8
        %s247 = scalar_lea.vmem %s4, %s246
        %v249 = vld [vmem:[%s209] sm:$0xf]
        %v250 = vld [vmem:[%s209 + $0x4] sm:$0xf]
        %v251 = vld [vmem:[#allocation4] sm:$0xf]
        %v252 = vld [vmem:[#allocation4 + $0x4] sm:$0xf]
        %v253 = vld [vmem:[#allocation4 + $0x8] sm:$0xf]
        %v254 = vld [vmem:[#allocation4 + $0xc] sm:$0xf]
        %v255 = vld [vmem:[#allocation4 + $0x10] sm:$0xf]
        %v256 = vld [vmem:[#allocation4 + $0x14] sm:$0xf]
        %v257 = vld [vmem:[#allocation4 + $0x18] sm:$0xf]
        %v258 = vld [vmem:[#allocation4 + $0x1c] sm:$0xf]
        %v259 = vld [vmem:[#allocation4 + $0x20] sm:$0xf]
        %v260 = vld [vmem:[#allocation4 + $0x24] sm:$0xf]
        %v261 = vld [vmem:[#allocation4 + $0x28] sm:$0xf]
        %v262 = vld [vmem:[#allocation4 + $0x2c] sm:$0xf]
        %v263 = vld [vmem:[#allocation4 + $0x30] sm:$0xf]
        %v264 = vld [vmem:[#allocation4 + $0x34] sm:$0xf]
        %v265 = vld [vmem:[#allocation4 + $0x38] sm:$0xf]
        %v266 = vld [vmem:[#allocation4 + $0x3c] sm:$0xf]
        %v269 = vunpack.c.l.b16 %v249
        %v270 = vunpack.c.l.b16 %v250
        %v271 = vpack.c.b16 %v270, %v269
        %v289 = vunpack.c.l.b16 %v251
        %v290 = vunpack.c.l.b16 %v252
        %v291 = vunpack.c.l.b16 %v253
        %v292 = vunpack.c.l.b16 %v254
        %v293 = vunpack.c.l.b16 %v255
        %v294 = vunpack.c.l.b16 %v256
        %v295 = vunpack.c.l.b16 %v257
        %v296 = vunpack.c.l.b16 %v258
        %v297 = vunpack.c.l.b16 %v259
        %v298 = vunpack.c.l.b16 %v260
        %v299 = vunpack.c.l.b16 %v261
        %v300 = vunpack.c.l.b16 %v262
        %v301 = vunpack.c.l.b16 %v263
        %v302 = vunpack.c.l.b16 %v264
        %v303 = vunpack.c.l.b16 %v265
        %v304 = vunpack.c.l.b16 %v266
        %v305 = vpack.c.b16 %v290, %v289
        %v306 = vpack.c.b16 %v292, %v291
        %v307 = vpack.c.b16 %v294, %v293
        %v308 = vpack.c.b16 %v296, %v295
        %v309 = vpack.c.b16 %v298, %v297
        %v310 = vpack.c.b16 %v300, %v299
        %v311 = vpack.c.b16 %v302, %v301
        %v312 = vpack.c.b16 %v304, %v303
        %321 = vmatprep.subr.bf16.mxu0 0
        %322 = vmatpush1.bf16.msra.mxu0 %v305
        %323 = vmatprep.subr.bf16.mxu0 0
        %324 = vmatpush1.bf16.msra.mxu0 %v306
        %325 = vmatprep.subr.bf16.mxu0 0
        %326 = vmatpush1.bf16.msra.mxu0 %v307
        %327 = vmatprep.subr.bf16.mxu0 0
        %328 = vmatpush1.bf16.msra.mxu0 %v308
        %329 = vmatprep.subr.bf16.mxu0 0
        %330 = vmatpush1.bf16.msra.mxu0 %v309
        %331 = vmatprep.subr.bf16.mxu0 0
        %332 = vmatpush1.bf16.msra.mxu0 %v310
        %333 = vmatprep.subr.bf16.mxu0 0
        %334 = vmatpush1.bf16.msra.mxu0 %v311
        %335 = vmatprep.subr.bf16.mxu0 0
        %336 = vmatpush1.bf16.msra.mxu0 %v312
        %337 = vmatprep.subr.bf16.mxu0 0
        %338 = vmatpush1.bf16.msra.mxu0 0
        %339 = vmatprep.subr.bf16.mxu0 0
        %340 = vmatpush1.bf16.msra.mxu0 0
        %341 = vmatprep.subr.bf16.mxu0 0
        %342 = vmatpush1.bf16.msra.mxu0 0
        %343 = vmatprep.subr.bf16.mxu0 0
        %344 = vmatpush1.bf16.msra.mxu0 0
        %345 = vmatprep.subr.bf16.mxu0 0
        %346 = vmatpush1.bf16.msra.mxu0 0
        %347 = vmatprep.subr.bf16.mxu0 0
        %348 = vmatpush1.bf16.msra.mxu0 0
        %349 = vmatprep.subr.bf16.mxu0 0
        %350 = vmatpush1.bf16.msra.mxu0 0
        %351 = vmatprep.subr.bf16.mxu0 0
        %352 = vmatpush1.bf16.msra.mxu0 0
        %353 = vmatprep.mubr.bf16.mxu0 0
        %354 = vmatmul.mubr.bf16.gmra.mrb[0].mxu0 %v271
        %v355 = vpop.f32.mrb[0].mxu0
        %v356 = vadd.f32 0.0, %v355
        %v357 = vpop.f32.mrb[0].mxu0
        %v358 = vpop.f32.mrb[0].mxu0
        %v359 = vadd.f32 0.0, %v358
        %v360 = vpop.f32.mrb[0].mxu0
        %361 = vdwg.mxu0
        %v362 = vld [vmem:[#allocation6] sm:$0xff]
        %v363 = vld [vmem:[#allocation6 + $0x8] sm:$0xff]
        %v364 = vadd.f32 %v356, %v362
        %v365 = vadd.f32 %v359, %v363
        %366 = vst [vmem:[%s247 + $0x1] sm:$0xff] %v364
        %367 = vst [vmem:[%s247 + $0x9] sm:$0xff] %v365
        %v368 = vld [vmem:[%s3] sm:$0x1]
        %369 = vst [vmem:[%s247] sm:$0x1] %v368
        %p370 = scmp.lt.s32.totalorder %s19, 1
        %s371 = scalar_select %p370, %s19, 1
        %s372 = smul.addr %s371, 3
        %s373 = smul.addr %s372, 8
        %s374 = scalar_lea.vmem %s4, %s373
        // Predicated region
        $region49: #{tpu_custom_call.1} parent=35 // pred_check
          %p375 = pneg %p126
        $region50: #{tpu_custom_call.1} parent=35 // pred_check_branch
          %377 = sbr.rel (%p375) target = $region52
        $region51: #{tpu_custom_call.1} parent=35 // pred_region
          _
        $region52: #{tpu_custom_call.1} parent=35 // pred_fallthru
          _
      $region36: #{tpu_custom_call.1} parent=5 // pred_fallthru
        _
      %p378 = scmp.le.s32.totalorder 2, %s14
      // Predicated region
      $region53: #{tpu_custom_call.1} parent=5 // pred_check
        %p379 = pneg %p378
      $region54: #{tpu_custom_call.1} parent=5 // pred_check_branch
        %381 = sbr.rel (%p379) target = $region56
      $region55: #{tpu_custom_call.1} parent=5 // pred_region
        %s382 = ssub.s32 %s14, 2
        // Predicated region
        $region57: #{tpu_custom_call.1} parent=55 // pred_check
          %p383 = pneg %p132
        $region58: #{tpu_custom_call.1} parent=55 // pred_check_branch
          %385 = sbr.rel (%p383) target = $region60
        $region59: #{tpu_custom_call.1} parent=55 // pred_region
          %p386 = scmp.lt.s32.totalorder %s20, 1
          %s387 = scalar_select %p386, %s20, 1
          %s388 = smul.addr %s387, 3
          %s389 = smul.addr %s388, 8
          %s390 = scalar_lea.vmem %s4, %s389
        $region60: #{tpu_custom_call.1} parent=55 // pred_fallthru
          _
      $region56: #{tpu_custom_call.1} parent=5 // pred_fallthru
        _
    $region6: #{tpu_custom_call.1} parent=1 // loop_footer
      %s18 = sadd.s32 1, %s14
    $region7: #{tpu_custom_call.1} parent=1 // loop_footer_branch
      %13 = sbr.rel target = $region3
    $region8: #{tpu_custom_call.1} parent=1 // loop_exit
      _
    %391 = vsyncpa [#allocation3], 1
    %s392 = scalar_lea.sflag [#allocation3], 1
    %393 = vsyncpa %s392, 1
    %394 = vsyncpa [#allocation5], 1

</llo_original>
